<compile_context>
chip_gen: v7x
topology: tpu7x:2x2x1
jax: 0.10.0
libtpu: 0.0.40
codegen_flags: <defaults>
</compile_context>

<pallas_src>
import numpy as np

import jax
import jax.numpy as jnp
from jax.experimental import pallas as pl
from jax.experimental.pallas import tpu as pltpu

POOL_SCALES = (1, 2, 3, 6)   # PPM pool scales (PSPNet default)
BN_EPS = 1e-5


# ----------------------------------------------------------------------------
# Small helpers
# ----------------------------------------------------------------------------
def _round_up(x, m):
    return ((x + m - 1) // m) * m


def _vmem_limit_bytes():
    """Leave headroom below physical VMEM (review item): ~52 MiB on a 64 MiB
    chip (v7x), ~108 MiB on a 128 MiB chip (v5e/v6e)."""
    cap = None
    try:
        cap = int(getattr(pltpu.get_tpu_info(), "vmem_capacity_bytes", 0)) or None
    except Exception:
        cap = None
    if not cap:
        cap = 64 * 1024 * 1024          # conservative fallback
    return int(min(cap - 12 * 1024 * 1024, int(0.85 * cap)))


def _pick_row_tile(n, max_tile=16):
    for t in range(min(max_tile, n), 0, -1):
        if n % t == 0:
            return t
    return 1


def _pick_pool_chunk_rows(Hp, Wpp, C5, itemsize, budget_bytes=8 << 20):
    best = 1
    for r in range(1, Hp + 1):
        if Hp % r == 0 and r * Wpp * C5 * itemsize <= budget_bytes:
            best = r
    return best


def _pick_co_tile(Co):
    for t in (256, 128):
        if Co > t and Co % t == 0:
            return t
    return Co


# ----------------------------------------------------------------------------
# Host-side constant matrices (tiny, shape-static, numpy)
# ----------------------------------------------------------------------------
def _adaptive_pool_matrix(in_size, out_size):
    """Row-stochastic matrix implementing nn.AdaptiveAvgPool semantics."""
    P = np.zeros((out_size, in_size), np.float32)
    for i in range(out_size):
        start = (i * in_size) // out_size
        end = ((i + 1) * in_size + out_size - 1) // out_size  # ceil
        P[i, start:end] = 1.0 / (end - start)
    return P


def _bilinear_matrix(out_size, in_size):
    """F.interpolate(mode='bilinear', align_corners=False) as a matrix."""
    U = np.zeros((out_size, in_size), np.float32)
    scale = in_size / out_size
    for h in range(out_size):
        src = (h + 0.5) * scale - 0.5
        src = max(src, 0.0)
        i0 = min(int(np.floor(src)), in_size - 1)
        i1 = min(i0 + 1, in_size - 1)
        lam = src - i0
        U[h, i0] += 1.0 - lam
        U[h, i1] += lam
    return U


def _build_ppm_constants(H, W, Wpp, Cp, SSp, scales):
    """Pool (transposed) / upsample matrices indexed in PADDED-flat coords.

    Padded layout: rows 0..H+1, cols 0..Wpp-1; real pixel (r, c) lives at flat
    index (r+1)*Wpp + (c+1).  Rows of Kt / U at padding positions are zero and
    the SS axis is zero-padded up to SSp (=64) so every matmul tile is full.
    """
    Hp = H + 2
    HWp = Hp * Wpp
    C4p = len(scales) * Cp
    Kt = np.zeros((HWp, SSp), np.float32)    # transposed stacked pool matrix
    U = np.zeros((HWp, SSp), np.float32)     # stacked bilinear upsample matrix
    mask = np.zeros((SSp, C4p), np.float32)  # scale-row x scale-channel validity
    row0 = 0
    for b, s in enumerate(scales):
        K2 = np.kron(_adaptive_pool_matrix(H, s), _adaptive_pool_matrix(W, s))
        U2 = np.kron(_bilinear_matrix(H, s), _bilinear_matrix(W, s))
        ss = s * s
        for r in range(H):
            c0 = (r + 1) * Wpp + 1
            Kt[c0:c0 + W, row0:row0 + ss] = K2[:, r * W:(r + 1) * W].T
            U[c0:c0 + W, row0:row0 + ss] = U2[r * W:(r + 1) * W, :]
        mask[row0:row0 + ss, b * Cp:(b + 1) * Cp] = 1.0
        row0 += ss
    return Kt, U, mask


# ----------------------------------------------------------------------------
# Kernel 1: PPM pooling + 1x1 conv + BN + ReLU, chunked over the HW axis.
# ----------------------------------------------------------------------------
def _ppm_pool_kernel(x_ref, kt_ref, w_ref, sc_ref, bi_ref, m_ref, y_ref, acc_ref):
    # x_ref : (1, CH, C5)    chunk of padded+flattened conv5 (one image)
    # kt_ref: (CH, SSp)      transposed stacked adaptive-pool matrix chunk
    # w_ref : (C5, C4p)      horizontally stacked 1x1 conv weights
    # sc/bi : (1, C4p)       folded eval-mode BatchNorm scale / bias (f32)
    # m_ref : (SSp, C4p)     block-diagonal validity mask (zero on SS padding)
    # y_ref : (1, SSp, C4p)  output: post-BN/ReLU pooled features
    # acc   : (SSp, C5) f32  pooled accumulator across the HW chunks
    hc = pl.program_id(1)

    @pl.when(hc == 0)
    def _():
        acc_ref[...] = jnp.zeros_like(acc_ref)

    # pooled[s, c] += sum_j Kt[j, s] * x[j, c]   (transposed-lhs contraction)
    acc_ref[...] += jax.lax.dot_general(
        kt_ref[...], x_ref[0],
        dimension_numbers=(((0,), (0,)), ((), ())),
        preferred_element_type=jnp.float32)

    @pl.when(hc == pl.num_programs(1) - 1)
    def _():
        y = jnp.dot(acc_ref[...].astype(w_ref.dtype), w_ref[...],
                    preferred_element_type=jnp.float32)
        y = jnp.maximum(y * sc_ref[...] + bi_ref[...], 0.0)
        y = y * m_ref[...].astype(jnp.float32)
        y_ref[0, :, :] = y.astype(y_ref.dtype)


# ----------------------------------------------------------------------------
# Kernel 2: fold the PPM half of the 3x3 conv weights into y (9 taps).
# ----------------------------------------------------------------------------
def _tap_project_kernel(y_ref, wb_ref, o_ref):
    # y_ref : (1, SSp, C4p); wb_ref: (1, C4p, Co); o_ref: (1, SSp, Co)
    o_ref[0, :, :] = jnp.dot(
        y_ref[0], wb_ref[0], preferred_element_type=jnp.float32
    ).astype(o_ref.dtype)


# ----------------------------------------------------------------------------
# Kernel 3: conv_last[0] = Conv2d(Cc -> Co, 3x3, pad=1, bias=False) with the
# PPM channels reconstructed on the fly (U_slab_rows @ yb[k]) plus the optional
# (x - running_mean) / (running_var + 1e-5) post-normalization.
# Row-tiled + Co-tiled; manual halo DMA of the identity channels, double
# buffered, next-slab prefetch issued before the current wait, crossing image
# boundaries; column shifts resolved with pltpu.roll (XLU).
# ----------------------------------------------------------------------------
def _make_conv3x3_kernel(TH, Wpp, SSp):
    Lrows = TH * Wpp            # flat rows per output block
    Srows = (TH + 2) * Wpp      # flat rows per input halo slab

    def kernel(xa_hbm, wa_ref, yb_ref, u_ref, mean_ref, inv_ref,
               o_ref, abuf, sem):
        # xa_hbm : (N, (H+2)*Wpp, C5)  padded identity channels (HBM)
        # wa_ref : (9, C5, TCo)        identity-channel 3x3 weights, k = kh*3+kw
        # yb_ref : (1, 9*SSp, TCo)     y @ wb[k] stacked over taps (per image)
        # u_ref  : ((H+2)*Wpp, SSp)    stacked (pre-padded) bilinear upsample mat
        # mean/inv: (1, TCo)           optional post-norm (zeros/ones when off)
        # o_ref  : (1, TH*Wpp, TCo)    output rows (padded width, cropped host side)
        n = pl.program_id(1)
        hb = pl.program_id(2)
        nn = pl.num_programs(1)
        nhb = pl.num_programs(2)
        slot = (n * nhb + hb) % 2

        def slab_copy(ni, hbi, s):
            # Same slice expression for start() and wait() (review concern).
            start = pl.multiple_of(hbi * Lrows, Wpp)
            return pltpu.make_async_copy(
                xa_hbm.at[ni, pl.ds(start, Srows), :], abuf.at[s], sem.at[s])

        # Prime once per (core-local) sweep over (N, HB); keyed on the first
        # step of the sweep so the parallel Co-tile axis stays megacore safe.
        @pl.when((n == 0) & (hb == 0))
        def _():
            slab_copy(n, hb, slot).start()

        # Prefetch the NEXT slab (crossing image boundaries) BEFORE waiting on
        # the current one, so its DMA overlaps this step's compute.
        last_hb = hb == nhb - 1
        n_next = jnp.where(last_hb, n + 1, n)
        hb_next = jnp.where(last_hb, 0, hb + 1)

        @pl.when(jnp.logical_not(last_hb & (n == nn - 1)))
        def _():
            slab_copy(n_next, hb_next, 1 - slot).start()

        slab_copy(n, hb, slot).wait()

        slab = abuf.at[slot]
        row0 = pl.multiple_of(hb * Lrows, Wpp)   # first slab row in global coords
        TCo = o_ref.shape[-1]
        mean = mean_ref[...]
        inv = inv_ref[...]

        # Sequential kw: only one (Lrows, TCo) f32 accumulator live besides res.
        res = None
        for kw in range(3):
            acc = jnp.zeros((Lrows, TCo), jnp.float32)
            for kh in range(3):
                k = kh * 3 + kw
                acc = acc + jnp.dot(slab[pl.ds(kh * Wpp, Lrows), :], wa_ref[k],
                                    preferred_element_type=jnp.float32)
                acc = acc + jnp.dot(u_ref[pl.ds(row0 + kh * Wpp, Lrows), :],
                                    yb_ref[0, k * SSp:(k + 1) * SSp, :],
                                    preferred_element_type=jnp.float32)
            if kw == 0:
                res = acc
            else:
                # out[i] += acc[i + kw] in flat padded-width coordinates.  The
                # wrapped rows only affect padded columns cc >= Wpp-2 >= W that
                # the host crop [:, :, :W, :] discards (requires Wpp >= W + 2,
                # asserted in the wrapper).
                res = res + pltpu.roll(acc, shift=Lrows - kw, axis=0)

        res = (res - mean) * inv
        o_ref[0, :, :] = res.astype(o_ref.dtype)

    return kernel


# ----------------------------------------------------------------------------
# Wrapper: T2.forward_decoder
# ----------------------------------------------------------------------------
def t2_forward_decoder(conv5_nchw, params, bn_param=None,
                       compute_dtype=jnp.bfloat16, out_dtype=jnp.float32,
                       row_tile=16, co_tile=None, pool_chunk_rows=None):
    N, C5, H, W = conv5_nchw.shape
    cdt = jnp.dtype(compute_dtype)
    sub = 8 * max(1, 4 // cdt.itemsize)        # packed sublane multiple (16 for bf16)
    Wpp = _round_up(W + 2, max(8, sub))        # padded width, sublane aligned
    assert Wpp >= W + 2                        # required by the roll-wrap crop
    Hp = H + 2
    HWp = Hp * Wpp
    scales = POOL_SCALES
    Cp = params["ppm"][scales[0]]["w"].shape[1]
    C4p = len(scales) * Cp
    Co = params["conv_last_w"].shape[-1]
    SS = sum(s * s for s in scales)
    SSp = _round_up(SS, 16)                    # 50 -> 64: full matmul tiles
    vmem_limit = _vmem_limit_bytes()

    # NCHW -> padded (halo) NHWC, flattened; the same array feeds both kernels.
    x_nhwc = jnp.transpose(conv5_nchw, (0, 2, 3, 1)).astype(cdt)
    xa = jnp.pad(x_nhwc, ((0, 0), (1, 1), (1, Wpp - W - 1), (0, 0)))
    xa_flat = xa.reshape(N, HWp, C5)

    # ------------------ PPM pooling (chunked over HW) ------------------------
    Kt, U, mask = _build_ppm_constants(H, W, Wpp, Cp, SSp, scales)
    W_wide = jnp.concatenate([params["ppm"][s]["w"] for s in scales], axis=1).astype(cdt)
    sc_wide = jnp.concatenate(
        [params["ppm"][s]["scale"] for s in scales])[None, :].astype(jnp.float32)
    bi_wide = jnp.concatenate(
        [params["ppm"][s]["bias"] for s in scales])[None, :].astype(jnp.float32)

    CR = pool_chunk_rows or _pick_pool_chunk_rows(Hp, Wpp, C5, cdt.itemsize)
    assert Hp % CR == 0
    CH = CR * Wpp
    HC = Hp // CR

    y = pl.pallas_call(
        _ppm_pool_kernel,
        out_shape=jax.ShapeDtypeStruct((N, SSp, C4p), cdt),
        grid=(N, HC),
        in_specs=[
            pl.BlockSpec((1, CH, C5), lambda n, hc: (n, hc, 0)),
            pl.BlockSpec((CH, SSp), lambda n, hc: (hc, 0)),
            pl.BlockSpec((C5, C4p), lambda n, hc: (0, 0)),
            pl.BlockSpec((1, C4p), lambda n, hc: (0, 0)),
            pl.BlockSpec((1, C4p), lambda n, hc: (0, 0)),
            pl.BlockSpec((SSp, C4p), lambda n, hc: (0, 0)),
        ],
        out_specs=pl.BlockSpec((1, SSp, C4p), lambda n, hc: (n, 0, 0)),
        scratch_shapes=[pltpu.VMEM((SSp, C5), jnp.float32)],
        compiler_params=pltpu.CompilerParams(
            dimension_semantics=("parallel", "arbitrary"),
            vmem_limit_bytes=vmem_limit),
    )(xa_flat, jnp.asarray(Kt, cdt), W_wide, sc_wide, bi_wide,
      jnp.asarray(mask, cdt))

    # --------- fold the PPM half of the 3x3 weights into y (9 taps) ----------
    w3 = params["conv_last_w"]                  # (9, Cc, Co), Cc = C5 + 4*Cp
    wa = w3[:, :C5, :].astype(cdt)              # identity-channel taps
    wb = w3[:, C5:, :].astype(cdt)              # PPM-channel taps
    yb = pl.pallas_call(
        _tap_project_kernel,
        out_shape=jax.ShapeDtypeStruct((N, 9 * SSp, Co), cdt),
        grid=(N, 9),
        in_specs=[
            pl.BlockSpec((1, SSp, C4p), lambda n, k: (n, 0, 0)),
            pl.BlockSpec((1, C4p, Co), lambda n, k: (k, 0, 0)),
        ],
        out_specs=pl.BlockSpec((1, SSp, Co), lambda n, k: (n, k, 0)),
        compiler_params=pltpu.CompilerParams(
            dimension_semantics=("parallel", "parallel"),
            vmem_limit_bytes=vmem_limit),
    )(y, wb)

    # --------- row-tiled, Co-tiled 3x3 conv with fused PPM upsample ----------
    TH = _pick_row_tile(H, row_tile)
    HB = H // TH
    TCo = co_tile if co_tile is not None else _pick_co_tile(Co)
    assert Co % TCo == 0 and (TCo == Co or TCo % 128 == 0)
    CB = Co // TCo

    if bn_param is not None:
        rm, rv = bn_param
        mean = rm.astype(jnp.float32)[None, :]
        inv = (1.0 / (rv.astype(jnp.float32) + 1e-5))[None, :]
    else:
        mean = jnp.zeros((1, Co), jnp.float32)
        inv = jnp.ones((1, Co), jnp.float32)

    out_flat = pl.pallas_call(
        _make_conv3x3_kernel(TH, Wpp, SSp),
        out_shape=jax.ShapeDtypeStruct((N, H * Wpp, Co), jnp.dtype(out_dtype)),
        grid=(CB, N, HB),
        in_specs=[
            pl.BlockSpec(memory_space=pl.ANY),                         # xa_flat (HBM)
            pl.BlockSpec((9, C5, TCo), lambda cb, n, hb: (0, 0, cb)),
            pl.BlockSpec((1, 9 * SSp, TCo), lambda cb, n, hb: (n, 0, cb)),
            pl.BlockSpec((HWp, SSp), lambda cb, n, hb: (0, 0)),
            pl.BlockSpec((1, TCo), lambda cb, n, hb: (0, cb)),
            pl.BlockSpec((1, TCo), lambda cb, n, hb: (0, cb)),
        ],
        out_specs=pl.BlockSpec((1, TH * Wpp, TCo), lambda cb, n, hb: (n, hb, cb)),
        scratch_shapes=[
            pltpu.VMEM((2, (TH + 2) * Wpp, C5), cdt),                  # halo slabs
            pltpu.SemaphoreType.DMA((2,)),
        ],
        compiler_params=pltpu.CompilerParams(
            dimension_semantics=("parallel", "arbitrary", "arbitrary"),
            vmem_limit_bytes=vmem_limit),
    )(xa_flat, wa, yb, jnp.asarray(U, cdt), mean, inv)

    out = out_flat.reshape(N, H, Wpp, Co)[:, :, :W, :]                 # crop width pad
    return jnp.transpose(out, (0, 3, 1, 2))                            # NCHW like torch


# ----------------------------------------------------------------------------
# Deterministic synthetic parameters (matching the module's __init__ shapes)
# ----------------------------------------------------------------------------
def init_params(key, C5, Cp, Co):
    params = {"ppm": {}}
    Cc = C5 + len(POOL_SCALES) * Cp
    for s in POOL_SCALES:
        key, k1, k2, k3, k4, k5 = jax.random.split(key, 6)
        # Conv2d(C5, Cp, 1, bias=False) weight, PyTorch layout (Cp, C5, 1, 1)
        w_pt = jax.random.normal(k1, (Cp, C5, 1, 1), jnp.float32) / np.sqrt(C5)
        gamma = 1.0 + 0.1 * jax.random.normal(k2, (Cp,), jnp.float32)
        beta = 0.1 * jax.random.normal(k3, (Cp,), jnp.float32)
        rmean = 0.05 * jax.random.normal(k4, (Cp,), jnp.float32)
        rvar = 1.0 + 0.1 * jnp.abs(jax.random.normal(k5, (Cp,), jnp.float32))
        scale = gamma / jnp.sqrt(rvar + BN_EPS)          # eval-mode BN fold
        bias = beta - rmean * scale
        params["ppm"][s] = {"w": w_pt[:, :, 0, 0].T, "scale": scale, "bias": bias}
    key, kc = jax.random.split(key)
    # Conv2d(Cc, Co, 3, padding=1, bias=False), PyTorch layout (Co, Cc, 3, 3)
    w3_pt = jax.random.normal(kc, (Co, Cc, 3, 3), jnp.float32) / np.sqrt(Cc * 9)
    params["conv_last_w"] = jnp.transpose(w3_pt, (2, 3, 1, 0)).reshape(9, Cc, Co)
    return params


# ----------------------------------------------------------------------------
# Plain-JAX reference (same math, no Pallas) used as a self-check
# ----------------------------------------------------------------------------
def _reference(conv5_nchw, params, bn_param=None):
    x = jnp.transpose(conv5_nchw.astype(jnp.float32), (0, 2, 3, 1))
    N, H, W, C5 = x.shape
    outs = [x]
    xf = x.reshape(N, H * W, C5)
    for s in POOL_SCALES:
        K = jnp.asarray(np.kron(_adaptive_pool_matrix(H, s), _adaptive_pool_matrix(W, s)))
        U = jnp.asarray(np.kron(_bilinear_matrix(H, s), _bilinear_matrix(W, s)))
        p = params["ppm"][s]
        pooled = jnp.einsum("ph,nhc->npc", K, xf)
        y = jnp.maximum(jnp.einsum("npc,cd->npd", pooled, p["w"]) * p["scale"] + p["bias"], 0.0)
        outs.append(jnp.einsum("hp,npd->nhd", U, y).reshape(N, H, W, -1))
    cat = jnp.concatenate(outs, axis=-1)
    w3 = params["conv_last_w"]
    Cc, Co = w3.shape[1], w3.shape[2]
    out = jax.lax.conv_general_dilated(
        cat, w3.reshape(3, 3, Cc, Co), (1, 1), "SAME",
        dimension_numbers=("NHWC", "HWIO", "NHWC"))
    if bn_param is not None:
        rm, rv = bn_param
        out = (out - rm) / (rv + 1e-5)      # module semantics: divide by var+eps
    return jnp.transpose(out, (0, 3, 1, 2))


if __name__ == "__main__":
    # Small synthetic conv5 feature map.  Co=256 so the Co-tile axis (CB=2) is
    # actually exercised with 128-lane tiles.
    N, C5, H, W = 2, 8, 12, 10
    Cp, Co = 16, 256

    key = jax.random.PRNGKey(0)
    kx, kp = jax.random.split(key)
    conv5 = jax.random.normal(kx, (N, C5, H, W), jnp.float32)
    params = init_params(kp, C5, Cp, Co)

    ref = jax.block_until_ready(_reference(conv5, params, bn_param=None))

    # Strict f32 check, forcing every tiling path: HB=3 row blocks, HC=2 pool
    # chunks, CB=2 Co tiles, cross-image slab prefetch.
    out32 = jax.block_until_ready(
        t2_forward_decoder(conv5, params, bn_param=None,
                           compute_dtype=jnp.float32, row_tile=4,
                           pool_chunk_rows=7))
    assert out32.shape == (N, Co, H, W), out32.shape
    np.testing.assert_allclose(np.asarray(out32), np.asarray(ref),
                               rtol=2e-4, atol=2e-4)

    # bn_param path ((x - mean) / (var + 1e-5), as in the torch module).
    rm = 0.1 * jax.random.normal(jax.random.PRNGKey(1), (Co,), jnp.float32)
    rv = 1.0 + 0.1 * jnp.abs(jax.random.normal(jax.random.PRNGKey(2), (Co,), jnp.float32))
    out_bn = jax.block_until_ready(
        t2_forward_decoder(conv5, params, bn_param=(rm, rv),
                           compute_dtype=jnp.float32, row_tile=4,
                           pool_chunk_rows=7))
    ref_bn = jax.block_until_ready(_reference(conv5, params, bn_param=(rm, rv)))
    np.testing.assert_allclose(np.asarray(out_bn), np.asarray(ref_bn),
                               rtol=2e-4, atol=2e-4)

    # bf16 fast path (production defaults): f32 MXU accumulation, loose tol.
    out_bf = jax.block_until_ready(
        t2_forward_decoder(conv5, params, bn_param=None,
                           compute_dtype=jnp.bfloat16))
    np.testing.assert_allclose(np.asarray(out_bf), np.asarray(ref),
                               rtol=0.15, atol=0.15)

    print("KERNEL_OK")
</pallas_src>

<mosaic_0001>
module attributes {stable_mosaic.version = 11 : i64} {
  func.func @_ppm_pool_kernel(%arg0: i32, %arg1: i32, %arg2: memref<1x112x8xf32, #tpu.memory_space<vmem>>, %arg3: memref<112x64xf32, #tpu.memory_space<vmem>>, %arg4: memref<8x64xf32, #tpu.memory_space<vmem>>, %arg5: memref<1x64xf32, #tpu.memory_space<vmem>>, %arg6: memref<1x64xf32, #tpu.memory_space<vmem>>, %arg7: memref<64x64xf32, #tpu.memory_space<vmem>>, %arg8: memref<1x64x64xf32, #tpu.memory_space<vmem>>, %arg9: memref<64x8xf32, #tpu.memory_space<vmem>>) attributes {dimension_semantics = [#tpu.dimension_semantics<parallel>, #tpu.dimension_semantics<arbitrary>], iteration_bounds = array<i64: 2, 2>, scalar_prefetch = 0 : i64, scratch_operands = 1 : i64, tpu.core_type = #tpu.core_type<tc>, window_params = [{transform_indices = @transform_0, window_bounds = array<i64: 1, 112, 8>}, {transform_indices = @transform_1, window_bounds = array<i64: 112, 64>}, {pipeline_mode = #tpu.pipeline_mode<synchronous>, transform_indices = @transform_2, window_bounds = array<i64: 8, 64>}, {pipeline_mode = #tpu.pipeline_mode<synchronous>, transform_indices = @transform_3, window_bounds = array<i64: 1, 64>}, {pipeline_mode = #tpu.pipeline_mode<synchronous>, transform_indices = @transform_4, window_bounds = array<i64: 1, 64>}, {pipeline_mode = #tpu.pipeline_mode<synchronous>, transform_indices = @transform_5, window_bounds = array<i64: 64, 64>}, {transform_indices = @transform_6, window_bounds = array<i64: 1, 64, 64>}]} {
    %c0_i32 = arith.constant 0 : i32
    %0 = arith.cmpi eq, %arg1, %c0_i32 : i32
    %1 = arith.extui %0 : i1 to i32
    %c0_i32_0 = arith.constant 0 : i32
    %2 = arith.cmpi ne, %1, %c0_i32_0 : i32
    scf.if %2 {
      %cst_10 = arith.constant 0.000000e+00 : f32
      %13 = vector.broadcast %cst_10 : f32 to vector<64x8xf32>
      %c0_11 = arith.constant 0 : index
      %c0_12 = arith.constant 0 : index
      %14 = vector.load %arg9[%c0_11, %c0_12] : memref<64x8xf32, #tpu.memory_space<vmem>>, vector<64x8xf32>
      tpu.vector_store %arg9[%c0_11, %c0_12], %13 {strides = array<i32>} : memref<64x8xf32, #tpu.memory_space<vmem>>, vector<64x8xf32>,
    } else {
    }
    %c0 = arith.constant 0 : index
    %c0_1 = arith.constant 0 : index
    %3 = vector.load %arg9[%c0, %c0_1] : memref<64x8xf32, #tpu.memory_space<vmem>>, vector<64x8xf32>
    %c0_2 = arith.constant 0 : index
    %c0_3 = arith.constant 0 : index
    %4 = vector.load %arg3[%c0_2, %c0_3] : memref<112x64xf32, #tpu.memory_space<vmem>>, vector<112x64xf32>
    %c0_4 = arith.constant 0 : index
    %c0_5 = arith.constant 0 : index
    %c0_6 = arith.constant 0 : index
    %5 = vector.load %arg2[%c0_4, %c0_5, %c0_6] : memref<1x112x8xf32, #tpu.memory_space<vmem>>, vector<1x112x8xf32>
    %6 = vector.shape_cast %5 : vector<1x112x8xf32> to vector<112x8xf32>
    %cst = arith.constant dense<0.000000e+00> : vector<64x8xf32>
    %7 = tpu.matmul %4, %6, %cst {dimension_numbers = #tpu.dot_dimension_numbers<[0], [0], [1], [1], [0, 1, 1, 1], [], []>} : vector<112x64xf32>, vector<112x8xf32>, vector<64x8xf32> -> vector<64x8xf32>
    %8 = arith.addf %3, %7 : vector<64x8xf32>
    %c0_7 = arith.constant 0 : index
    %c0_8 = arith.constant 0 : index
    %9 = vector.load %arg9[%c0_7, %c0_8] : memref<64x8xf32, #tpu.memory_space<vmem>>, vector<64x8xf32>
    tpu.vector_store %arg9[%c0_7, %c0_8], %8 {strides = array<i32>} : memref<64x8xf32, #tpu.memory_space<vmem>>, vector<64x8xf32>,
    %c1_i32 = arith.constant 1 : i32
    %10 = arith.cmpi eq, %arg1, %c1_i32 : i32
    %11 = arith.extui %10 : i1 to i32
    %c0_i32_9 = arith.constant 0 : i32
    %12 = arith.cmpi ne, %11, %c0_i32_9 : i32
    scf.if %12 {
      %c0_10 = arith.constant 0 : index
      %c0_11 = arith.constant 0 : index
      %13 = vector.load %arg9[%c0_10, %c0_11] : memref<64x8xf32, #tpu.memory_space<vmem>>, vector<64x8xf32>
      %c0_12 = arith.constant 0 : index
      %c0_13 = arith.constant 0 : index
      %14 = vector.load %arg4[%c0_12, %c0_13] : memref<8x64xf32, #tpu.memory_space<vmem>>, vector<8x64xf32>
      %cst_14 = arith.constant dense<0.000000e+00> : vector<64x64xf32>
      %15 = tpu.matmul %13, %14, %cst_14 {dimension_numbers = #tpu.dot_dimension_numbers<[1], [0], [0], [1], [0, 0, 1, 1], [], []>} : vector<64x8xf32>, vector<8x64xf32>, vector<64x64xf32> -> vector<64x64xf32>
      %c0_15 = arith.constant 0 : index
      %c0_16 = arith.constant 0 : index
      %16 = vector.load %arg5[%c0_15, %c0_16] : memref<1x64xf32, #tpu.memory_space<vmem>>, vector<1x64xf32>
      %17 = vector.broadcast %16 : vector<1x64xf32> to vector<64x64xf32>
      %18 = arith.mulf %15, %17 : vector<64x64xf32>
      %c0_17 = arith.constant 0 : index
      %c0_18 = arith.constant 0 : index
      %19 = vector.load %arg6[%c0_17, %c0_18] : memref<1x64xf32, #tpu.memory_space<vmem>>, vector<1x64xf32>
      %20 = vector.broadcast %19 : vector<1x64xf32> to vector<64x64xf32>
      %21 = arith.addf %18, %20 : vector<64x64xf32>
      %cst_19 = arith.constant 0.000000e+00 : f32
      %22 = vector.broadcast %cst_19 : f32 to vector<64x64xf32>
      %23 = arith.maximumf %21, %22 : vector<64x64xf32>
      %c0_20 = arith.constant 0 : index
      %c0_21 = arith.constant 0 : index
      %24 = vector.load %arg7[%c0_20, %c0_21] : memref<64x64xf32, #tpu.memory_space<vmem>>, vector<64x64xf32>
      %25 = arith.mulf %23, %24 : vector<64x64xf32>
      %c0_22 = arith.constant 0 : index
      %c0_23 = arith.constant 0 : index
      %c0_24 = arith.constant 0 : index
      %26 = vector.load %arg8[%c0_22, %c0_23, %c0_24] : memref<1x64x64xf32, #tpu.memory_space<vmem>>, vector<1x64x64xf32>
      %27 = vector.shape_cast %26 : vector<1x64x64xf32> to vector<64x64xf32>
      %28 = vector.shape_cast %25 : vector<64x64xf32> to vector<1x64x64xf32>
      tpu.vector_store %arg8[%c0_22, %c0_23, %c0_24], %28 {strides = array<i32>} : memref<1x64x64xf32, #tpu.memory_space<vmem>>, vector<1x64x64xf32>,
    } else {
    }
    return
  }
  func.func @transform_0(%arg0: i32, %arg1: i32) -> (i32, i32, i32) {
    %c0_i32 = arith.constant 0 : i32
    %c0_i32_0 = arith.constant 0 : i32
    return %arg0, %arg1, %c0_i32 : i32, i32, i32
  }
  func.func @transform_1(%arg0: i32, %arg1: i32) -> (i32, i32) {
    %c0_i32 = arith.constant 0 : i32
    %c0_i32_0 = arith.constant 0 : i32
    return %arg1, %c0_i32 : i32, i32
  }
  func.func @transform_2(%arg0: i32, %arg1: i32) -> (i32, i32) {
    %c0_i32 = arith.constant 0 : i32
    %c0_i32_0 = arith.constant 0 : i32
    %c0_i32_1 = arith.constant 0 : i32
    return %c0_i32, %c0_i32_0 : i32, i32
  }
  func.func @transform_3(%arg0: i32, %arg1: i32) -> (i32, i32) {
    %c0_i32 = arith.constant 0 : i32
    %c0_i32_0 = arith.constant 0 : i32
    %c0_i32_1 = arith.constant 0 : i32
    return %c0_i32, %c0_i32_0 : i32, i32
  }
  func.func @transform_4(%arg0: i32, %arg1: i32) -> (i32, i32) {
    %c0_i32 = arith.constant 0 : i32
    %c0_i32_0 = arith.constant 0 : i32
    %c0_i32_1 = arith.constant 0 : i32
    return %c0_i32, %c0_i32_0 : i32, i32
  }
  func.func @transform_5(%arg0: i32, %arg1: i32) -> (i32, i32) {
    %c0_i32 = arith.constant 0 : i32
    %c0_i32_0 = arith.constant 0 : i32
    %c0_i32_1 = arith.constant 0 : i32
    return %c0_i32, %c0_i32_0 : i32, i32
  }
  func.func @transform_6(%arg0: i32, %arg1: i32) -> (i32, i32, i32) {
    %c0_i32 = arith.constant 0 : i32
    %c0_i32_0 = arith.constant 0 : i32
    %c0_i32_1 = arith.constant 0 : i32
    return %arg0, %c0_i32, %c0_i32_0 : i32, i32, i32
  }
}

</mosaic_0001>

<llo_original>
// kernel: tpu_custom_call.1
$region0: #{tpu_custom_call.1}
  #allocation0 [shape = 'u32[]', space=smem, size = 0x4, offset = 0x4, fixed_abs, tag = 'smem constant byte address 0x4 - core index']
  #allocation1 [shape = 'u32[144,128]{1,0:T(1,128)}', space=vmem, size = 0x12000, scoped, tag = 'internal scratch']
  #allocation2 [shape = 'f32[64,8]{1,0:T(8,128)}', space=vmem, size = 0x8000, scoped, tag = 'scratch operand']
  %s0 = inlined_call_operand.vmem [shape: f32[2,224,8], index: 0, kind: input, shape index: {}]
  %s1 = inlined_call_operand.vmem [shape: f32[224,64], index: 1, kind: input, shape index: {}]
  %s2 = inlined_call_operand.vmem [shape: f32[8,64], index: 2, kind: input, shape index: {}]
  %s3 = inlined_call_operand.vmem [shape: f32[1,64], index: 3, kind: input, shape index: {}]
  %s4 = inlined_call_operand.vmem [shape: f32[1,64], index: 4, kind: input, shape index: {}]
  %s5 = inlined_call_operand.vmem [shape: f32[64,64], index: 5, kind: input, shape index: {}]
  %s6 = inlined_call_operand.hbm [shape: f32[2,64,64], index: 6, kind: output, shape index: {}]
  %s7 = sld [smem:[#allocation0]]
  $region65: #{tpu_custom_call.1} parent=0
    _
  %s9 = ssub.s32 1, %s7
  %s10 = scalar_select 0, %s9, %s7
  $region1: #{tpu_custom_call.1} parent=0
    #allocation3 [shape = 'u8[65536]{0}', space=vmem, size = 0x10000, scoped, tag = 'output window, operand 0']
    #allocation4 [shape = 's32[2]{0}', space=sflag, size = 0x8, scoped, tag = 'scoped memory for tpu_custom_call.1']
    %11 = vsyncpa [#allocation4], 0
    %s12 = scalar_lea.sflag [#allocation4], 1
    %13 = vsyncpa %s12, 0
    loop: start=0, step=1, limit=6
    $region2: #{tpu_custom_call.1} parent=1 // loop_pre_header
      _
    $region3: #{tpu_custom_call.1} parent=1 // loop_header
      %s15 = sphi 0, %s19
      %p16 = scmp.ge.s32.totalorder %s15, 6
      %s22 = sphi 0, %s34
      %s23 = sphi 0, %s30
      %s24 = sphi 0, %s22
      %s25 = sphi 0, %s23
      %s26 = sphi 0, %s24
      %s27 = sphi 0, %s25
      %s39 = sphi 0, %s41
      %s42 = sphi 0, %s39
      %s43 = sphi 0, %s42
      %s59 = sphi 0, %s43
      %s65 = sphi 0, %s67
      %s68 = sphi 0, %s65
      %s69 = sphi 0, %s68
      %s85 = sphi 0, %s69
      %s89 = sphi 0, %s89
      %s91 = sphi 0, %s89
      %s92 = sphi 0, %s91
      %s106 = sphi 0, %s92
      %s110 = sphi 0, %s110
      %s112 = sphi 0, %s110
      %s113 = sphi 0, %s112
      %s127 = sphi 0, %s113
      %s131 = sphi 0, %s131
      %s133 = sphi 0, %s131
      %s134 = sphi 0, %s133
      %s148 = sphi 0, %s134
      %s152 = sphi 0, %s152
      %s154 = sphi 0, %s152
      %s155 = sphi 0, %s154
      %s169 = sphi 0, %s155
      %s175 = sphi 0, %s177
      %s178 = sphi 0, %s175
      %s179 = sphi 0, %s178
      %s195 = sphi 0, %s179
    $region4: #{tpu_custom_call.1} parent=1 // loop_header_branch
      %18 = sbr.rel (%p16) target = $region8
    $region5: #{tpu_custom_call.1} parent=1 // loop_body
      %s20 = ssub.s32 %s15, 1
      %s21 = ssub.s32 %s15, 2
      %s28 = sadd.s32 1, %s23
      %p29 = scmp.ge.s32.totalorder %s28, 2
      %s30 = scalar_select %p29, 0, %s28
      %s31 = sadd.s32 1, %s22
      %s32 = scalar_select %p29, %s31, %s22
      %p33 = scmp.ge.s32.totalorder %s32, 2
      %s34 = scalar_select %p33, 0, %s32
      %s35 = ssub.s32 %s22, %s34
      %s36 = ssub.s32 %s23, %s30
      %s37 = sor.u32 %s35, %s36
      %p38 = scmp.eq.s32.totalorder %s37, 0
      %s40 = sadd.s32 %s39, 1
      %s41 = scalar_select %p38, %s39, %s40
      %p44 = pneg %p38
      %p45 = scmp.eq.s32.totalorder %s15, 3
      %p46 = por %p44, %p45
      %p47 = scmp.ne.s32.totalorder %s39, %s42
      %p48 = scmp.eq.s32.totalorder %s15, 0
      %p49 = por %p47, %p48
      %p50 = scmp.ne.s32.totalorder %s39, %s42
      %p51 = scmp.eq.s32.totalorder %s20, 3
      %p52 = por %p50, %p51
      %p53 = scmp.ne.s32.totalorder %s42, %s43
      %p54 = scmp.eq.s32.totalorder %s20, 0
      %p55 = por %p53, %p54
      %p56 = scmp.ne.s32.totalorder %s42, %s43
      %p57 = scmp.eq.s32.totalorder %s21, 3
      %p58 = por %p56, %p57
      %p60 = scmp.ne.s32.totalorder %s43, %s59
      %p61 = scmp.eq.s32.totalorder %s21, 0
      %p62 = por %p60, %p61
      %s63 = ssub.s32 %s23, %s30
      %p64 = scmp.eq.s32.totalorder %s63, 0
      %s66 = sadd.s32 %s65, 1
      %s67 = scalar_select %p64, %s65, %s66
      %p70 = pneg %p64
      %p71 = scmp.eq.s32.totalorder %s15, 3
      %p72 = por %p70, %p71
      %p73 = scmp.ne.s32.totalorder %s65, %s68
      %p74 = scmp.eq.s32.totalorder %s15, 0
      %p75 = por %p73, %p74
      %p76 = scmp.ne.s32.totalorder %s65, %s68
      %p77 = scmp.eq.s32.totalorder %s20, 3
      %p78 = por %p76, %p77
      %p79 = scmp.ne.s32.totalorder %s68, %s69
      %p80 = scmp.eq.s32.totalorder %s20, 0
      %p81 = por %p79, %p80
      %p82 = scmp.ne.s32.totalorder %s68, %s69
      %p83 = scmp.eq.s32.totalorder %s21, 3
      %p84 = por %p82, %p83
      %p86 = scmp.ne.s32.totalorder %s69, %s85
      %p87 = scmp.eq.s32.totalorder %s21, 0
      %p88 = por %p86, %p87
      %s90 = sadd.s32 %s89, 1
      %p93 = scmp.eq.s32.totalorder %s15, 3
      %p94 = scmp.ne.s32.totalorder %s89, %s91
      %p95 = scmp.eq.s32.totalorder %s15, 0
      %p96 = por %p94, %p95
      %p97 = scmp.ne.s32.totalorder %s89, %s91
      %p98 = scmp.eq.s32.totalorder %s20, 3
      %p99 = por %p97, %p98
      %p100 = scmp.ne.s32.totalorder %s91, %s92
      %p101 = scmp.eq.s32.totalorder %s20, 0
      %p102 = por %p100, %p101
      %p103 = scmp.ne.s32.totalorder %s91, %s92
      %p104 = scmp.eq.s32.totalorder %s21, 3
      %p105 = por %p103, %p104
      %p107 = scmp.ne.s32.totalorder %s92, %s106
      %p108 = scmp.eq.s32.totalorder %s21, 0
      %p109 = por %p107, %p108
      %s111 = sadd.s32 %s110, 1
      %p114 = scmp.eq.s32.totalorder %s15, 3
      %p115 = scmp.ne.s32.totalorder %s110, %s112
      %p116 = scmp.eq.s32.totalorder %s15, 0
      %p117 = por %p115, %p116
      %p118 = scmp.ne.s32.totalorder %s110, %s112
      %p119 = scmp.eq.s32.totalorder %s20, 3
      %p120 = por %p118, %p119
      %p121 = scmp.ne.s32.totalorder %s112, %s113
      %p122 = scmp.eq.s32.totalorder %s20, 0
      %p123 = por %p121, %p122
      %p124 = scmp.ne.s32.totalorder %s112, %s113
      %p125 = scmp.eq.s32.totalorder %s21, 3
      %p126 = por %p124, %p125
      %p128 = scmp.ne.s32.totalorder %s113, %s127
      %p129 = scmp.eq.s32.totalorder %s21, 0
      %p130 = por %p128, %p129
      %s132 = sadd.s32 %s131, 1
      %p135 = scmp.eq.s32.totalorder %s15, 3
      %p136 = scmp.ne.s32.totalorder %s131, %s133
      %p137 = scmp.eq.s32.totalorder %s15, 0
      %p138 = por %p136, %p137
      %p139 = scmp.ne.s32.totalorder %s131, %s133
      %p140 = scmp.eq.s32.totalorder %s20, 3
      %p141 = por %p139, %p140
      %p142 = scmp.ne.s32.totalorder %s133, %s134
      %p143 = scmp.eq.s32.totalorder %s20, 0
      %p144 = por %p142, %p143
      %p145 = scmp.ne.s32.totalorder %s133, %s134
      %p146 = scmp.eq.s32.totalorder %s21, 3
      %p147 = por %p145, %p146
      %p149 = scmp.ne.s32.totalorder %s134, %s148
      %p150 = scmp.eq.s32.totalorder %s21, 0
      %p151 = por %p149, %p150
      %s153 = sadd.s32 %s152, 1
      %p156 = scmp.eq.s32.totalorder %s15, 3
      %p157 = scmp.ne.s32.totalorder %s152, %s154
      %p158 = scmp.eq.s32.totalorder %s15, 0
      %p159 = por %p157, %p158
      %p160 = scmp.ne.s32.totalorder %s152, %s154
      %p161 = scmp.eq.s32.totalorder %s20, 3
      %p162 = por %p160, %p161
      %p163 = scmp.ne.s32.totalorder %s154, %s155
      %p164 = scmp.eq.s32.totalorder %s20, 0
      %p165 = por %p163, %p164
      %p166 = scmp.ne.s32.totalorder %s154, %s155
      %p167 = scmp.eq.s32.totalorder %s21, 3
      %p168 = por %p166, %p167
      %p170 = scmp.ne.s32.totalorder %s155, %s169
      %p171 = scmp.eq.s32.totalorder %s21, 0
      %p172 = por %p170, %p171
      %s173 = ssub.s32 %s22, %s34
      %p174 = scmp.eq.s32.totalorder %s173, 0
      %s176 = sadd.s32 %s175, 1
      %s177 = scalar_select %p174, %s175, %s176
      %p180 = pneg %p174
      %p181 = scmp.eq.s32.totalorder %s15, 3
      %p182 = por %p180, %p181
      %p183 = scmp.ne.s32.totalorder %s175, %s178
      %p184 = scmp.eq.s32.totalorder %s15, 0
      %p185 = por %p183, %p184
      %p186 = scmp.ne.s32.totalorder %s175, %s178
      %p187 = scmp.eq.s32.totalorder %s20, 3
      %p188 = por %p186, %p187
      %p189 = scmp.ne.s32.totalorder %s178, %s179
      %p190 = scmp.eq.s32.totalorder %s20, 0
      %p191 = por %p189, %p190
      %p192 = scmp.ne.s32.totalorder %s178, %s179
      %p193 = scmp.eq.s32.totalorder %s21, 3
      %p194 = por %p192, %p193
      %p196 = scmp.ne.s32.totalorder %s179, %s195
      %p197 = scmp.eq.s32.totalorder %s21, 0
      %p198 = por %p196, %p197
      %p199 = scmp.le.s32.totalorder 1, %s15
      %p200 = scmp.lt.s32.totalorder %s15, 5
      %p201 = pnand %p199, %p200
      %p202 = pneg %p201
      // Predicated region
      $region9: #{tpu_custom_call.1} parent=5 // pred_check
        _
      $region10: #{tpu_custom_call.1} parent=5 // pred_check_branch
        %204 = sbr.rel (%p201) target = $region12
      $region11: #{tpu_custom_call.1} parent=5 // pred_region
        %s205 = ssub.s32 %s15, 1
        // Predicated region
        $region13: #{tpu_custom_call.1} parent=11 // pred_check
          %p206 = pneg %p102
        $region14: #{tpu_custom_call.1} parent=11 // pred_check_branch
          %208 = sbr.rel (%p206) target = $region16
        $region15: #{tpu_custom_call.1} parent=11 // pred_region
          _
        $region16: #{tpu_custom_call.1} parent=11 // pred_fallthru
          _
        // Predicated region
        $region17: #{tpu_custom_call.1} parent=11 // pred_check
          %p209 = pneg %p123
        $region18: #{tpu_custom_call.1} parent=11 // pred_check_branch
          %211 = sbr.rel (%p209) target = $region20
        $region19: #{tpu_custom_call.1} parent=11 // pred_region
          _
        $region20: #{tpu_custom_call.1} parent=11 // pred_fallthru
          _
        // Predicated region
        $region21: #{tpu_custom_call.1} parent=11 // pred_check
          %p212 = pneg %p144
        $region22: #{tpu_custom_call.1} parent=11 // pred_check_branch
          %214 = sbr.rel (%p212) target = $region24
        $region23: #{tpu_custom_call.1} parent=11 // pred_region
          _
        $region24: #{tpu_custom_call.1} parent=11 // pred_fallthru
          _
        // Predicated region
        $region25: #{tpu_custom_call.1} parent=11 // pred_check
          %p215 = pneg %p165
        $region26: #{tpu_custom_call.1} parent=11 // pred_check_branch
          %217 = sbr.rel (%p215) target = $region28
        $region27: #{tpu_custom_call.1} parent=11 // pred_region
          _
        $region28: #{tpu_custom_call.1} parent=11 // pred_fallthru
          _
      $region12: #{tpu_custom_call.1} parent=5 // pred_fallthru
        _
      %p218 = scmp.lt.s32.totalorder %s15, 4
      // Predicated region
      $region29: #{tpu_custom_call.1} parent=5 // pred_check
        %p219 = pneg %p218
      $region30: #{tpu_custom_call.1} parent=5 // pred_check_branch
        %221 = sbr.rel (%p219) target = $region32
      $region31: #{tpu_custom_call.1} parent=5 // pred_region
        // Predicated region
        $region33: #{tpu_custom_call.1} parent=31 // pred_check
          %p222 = pneg %p49
        $region34: #{tpu_custom_call.1} parent=31 // pred_check_branch
          %224 = sbr.rel (%p222) target = $region36
        $region35: #{tpu_custom_call.1} parent=31 // pred_region
          %s225 = smul.u32 14, %s23
          %p226 = scmp.lt.s32.totalorder %s22, 1
          %s227 = scalar_select %p226, %s22, 1
          %p228 = scmp.lt.s32.totalorder %s225, 27
          %s229 = scalar_select %p228, %s225, 27
          %s230 = smul.addr %s227, 28
          %s231 = sadd.s32 %s229, %s230
          %s232 = smul.addr %s231, 8
          %s233 = scalar_lea.vmem %s0, %s232
          %s234 = smul.u32 14, %s23
        $region36: #{tpu_custom_call.1} parent=31 // pred_fallthru
          _
        // Predicated region
        $region37: #{tpu_custom_call.1} parent=31 // pred_check
          %p235 = pneg %p75
        $region38: #{tpu_custom_call.1} parent=31 // pred_check_branch
          %237 = sbr.rel (%p235) target = $region40
        $region39: #{tpu_custom_call.1} parent=31 // pred_region
          %s238 = smul.u32 14, %s23
          %p239 = scmp.lt.s32.totalorder %s238, 27
          %s240 = scalar_select %p239, %s238, 27
          %s241 = smul.addr %s240, 8
          %s242 = scalar_lea.vmem %s1, %s241
          %s243 = smul.u32 14, %s23
        $region40: #{tpu_custom_call.1} parent=31 // pred_fallthru
          _
      $region32: #{tpu_custom_call.1} parent=5 // pred_fallthru
        _
      %p244 = scmp.le.s32.totalorder 1, %s15
      %p245 = scmp.lt.s32.totalorder %s15, 5
      %p246 = pnand %p244, %p245
      %p247 = pneg %p246
      // Predicated region
      $region41: #{tpu_custom_call.1} parent=5 // pred_check
        _
      $region42: #{tpu_custom_call.1} parent=5 // pred_check_branch
        %249 = sbr.rel (%p246) target = $region44
      $region43: #{tpu_custom_call.1} parent=5 // pred_region
        %s250 = ssub.s32 %s15, 1
        %s251 = smul.u32 14, %s25
        %p252 = scmp.lt.s32.totalorder %s24, 1
        %s253 = scalar_select %p252, %s24, 1
        %p254 = scmp.lt.s32.totalorder %s251, 27
        %s255 = scalar_select %p254, %s251, 27
        %s256 = smul.addr %s253, 28
        %s257 = sadd.s32 %s255, %s256
        %s258 = smul.addr %s257, 8
        %s259 = scalar_lea.vmem %s0, %s258
        %p260 = pneg %p55
        %p261 = pneg %p52
        %s262 = smul.u32 14, %s25
        %p263 = scmp.lt.s32.totalorder %s262, 27
        %s264 = scalar_select %p263, %s262, 27
        %s265 = smul.addr %s264, 8
        %s266 = scalar_lea.vmem %s1, %s265
        %p267 = pneg %p81
        %p268 = pneg %p78
        %p269 = pneg %p102
        %p270 = pneg %p99
        %p271 = pneg %p123
        %p272 = pneg %p120
        %p273 = pneg %p144
        %p274 = pneg %p141
        %p275 = pneg %p165
        %p276 = pneg %p162
        %p277 = pneg %p191
        %p278 = pneg %p188
        %s279 = sand.u32 %s178, 1
        %s280 = scalar_lea.sflag [#allocation4], %s279
        %s281 = sand.u32 %s178, 1
        %s282 = smul.addr %s281, 64
        %s283 = scalar_lea.vmem [#allocation3], %s282
        %s284 = smul.u32 14, %s25
        %p285 = scmp.lt.s32.totalorder %s24, 1
        %s286 = scalar_select %p285, %s24, 1
        %p287 = scmp.lt.s32.totalorder %s284, 27
        %s288 = scalar_select %p287, %s284, 27
        %s289 = smul.addr %s286, 28
        %s290 = sadd.s32 %s288, %s289
        %s291 = smul.addr %s290, 8
        %s292 = scalar_lea.vmem %s0, %s291
        %s293 = smul.u32 14, %s25
        %s294 = smul.u32 14, %s25
        %p295 = scmp.lt.s32.totalorder %s294, 27
        %s296 = scalar_select %p295, %s294, 27
        %s297 = smul.addr %s296, 8
        %s298 = scalar_lea.vmem %s1, %s297
        %s299 = smul.u32 14, %s25
        %p300 = scmp.eq.s32.totalorder %s25, 0
        // Predicated region
        $region45: #{tpu_custom_call.1} parent=43 // pred_check
          %p301 = pneg %p300
        $region46: #{tpu_custom_call.1} parent=43 // pred_check_branch
          %303 = sbr.rel (%p301) target = $region48
        $region47: #{tpu_custom_call.1} parent=43 // pred_region
          %vm304 = vcmask 64512
          %305 = vst.msk [vmem:[#allocation2] sm:$0xff] %vm304, 0.0
          %306 = vst.msk [vmem:[#allocation2 + $0x8] sm:$0xff] %vm304, 0.0
          %307 = vst.msk [vmem:[#allocation2 + $0x10] sm:$0xff] %vm304, 0.0
          %308 = vst.msk [vmem:[#allocation2 + $0x18] sm:$0xff] %vm304, 0.0
          %309 = vst.msk [vmem:[#allocation2 + $0x20] sm:$0xff] %vm304, 0.0
          %310 = vst.msk [vmem:[#allocation2 + $0x28] sm:$0xff] %vm304, 0.0
          %311 = vst.msk [vmem:[#allocation2 + $0x30] sm:$0xff] %vm304, 0.0
          %312 = vst.msk [vmem:[#allocation2 + $0x38] sm:$0xff] %vm304, 0.0
        $region48: #{tpu_custom_call.1} parent=43 // pred_fallthru
          _
        %v313 = vld [vmem:[#allocation2] sm:$0xff]
        %v314 = vld [vmem:[#allocation2 + $0x8] sm:$0xff]
        %v315 = vld [vmem:[#allocation2 + $0x10] sm:$0xff]
        %v316 = vld [vmem:[#allocation2 + $0x18] sm:$0xff]
        %v317 = vld [vmem:[#allocation2 + $0x20] sm:$0xff]
        %v318 = vld [vmem:[#allocation2 + $0x28] sm:$0xff]
        %v319 = vld [vmem:[#allocation2 + $0x30] sm:$0xff]
        %v320 = vld [vmem:[#allocation2 + $0x38] sm:$0xff]
        %v321 = vld [vmem:[%s298] sm:$0xff]
        %v322 = vld [vmem:[%s298 + $0x8] sm:$0xff]
        %v323 = vld [vmem:[%s298 + $0x10] sm:$0xff]
        %v324 = vld [vmem:[%s298 + $0x18] sm:$0xff]
        %v325 = vld [vmem:[%s298 + $0x20] sm:$0xff]
        %v326 = vld [vmem:[%s298 + $0x28] sm:$0xff]
        %v327 = vld [vmem:[%s298 + $0x30] sm:$0xff]
        %v328 = vld [vmem:[%s298 + $0x38] sm:$0xff]
        %v329 = vld [vmem:[%s298 + $0x40] sm:$0xff]
        %v330 = vld [vmem:[%s298 + $0x48] sm:$0xff]
        %v331 = vld [vmem:[%s298 + $0x50] sm:$0xff]
        %v332 = vld [vmem:[%s298 + $0x58] sm:$0xff]
        %v333 = vld [vmem:[%s298 + $0x60] sm:$0xff]
        %v334 = vld [vmem:[%s298 + $0x68] sm:$0xff]
        %v335 = vld [vmem:[%s292] sm:$0xff]
        %v336 = vld [vmem:[%s292 + $0x8] sm:$0xff]
        %v337 = vld [vmem:[%s292 + $0x10] sm:$0xff]
        %v338 = vld [vmem:[%s292 + $0x18] sm:$0xff]
        %v339 = vld [vmem:[%s292 + $0x20] sm:$0xff]
        %v340 = vld [vmem:[%s292 + $0x28] sm:$0xff]
        %v341 = vld [vmem:[%s292 + $0x30] sm:$0xff]
        %v342 = vld [vmem:[%s292 + $0x38] sm:$0xff]
        %v343 = vld [vmem:[%s292 + $0x40] sm:$0xff]
        %v344 = vld [vmem:[%s292 + $0x48] sm:$0xff]
        %v345 = vld [vmem:[%s292 + $0x50] sm:$0xff]
        %v346 = vld [vmem:[%s292 + $0x58] sm:$0xff]
        %v347 = vld [vmem:[%s292 + $0x60] sm:$0xff]
        %v348 = vld [vmem:[%s292 + $0x68] sm:$0xff]
        %349 = vxpose.xlu0.b32.start [1/16] %v321, 128
        %350 = vxpose.xlu0.b32.cont [2/16] %v322, 128
        %351 = vxpose.xlu0.b32.cont [3/16] %v323, 128
        %352 = vxpose.xlu0.b32.cont [4/16] %v324, 128
        %353 = vxpose.xlu0.b32.cont [5/16] %v325, 128
        %354 = vxpose.xlu0.b32.cont [6/16] %v326, 128
        %355 = vxpose.xlu0.b32.cont [7/16] %v327, 128
        %356 = vxpose.xlu0.b32.cont [8/16] %v328, 128
        %357 = vxpose.xlu0.b32.cont [9/16] %v329, 128
        %358 = vxpose.xlu0.b32.cont [10/16] %v330, 128
        %359 = vxpose.xlu0.b32.cont [11/16] %v331, 128
        %360 = vxpose.xlu0.b32.cont [12/16] %v332, 128
        %361 = vxpose.xlu0.b32.cont [13/16] %v333, 128
        %362 = vxpose.xlu0.b32.cont [14/16] %v334, 128
        %363 = vxpose.xlu0.b32.cont [15/16] 0.0, 128
        %364 = vxpose.xlu0.b32.end [16/16] 0.0, 128
        %v365 = vpop.trf.xlu0
        %v366 = vpop.trf.xlu0
        %v367 = vpop.trf.xlu0
        %v368 = vpop.trf.xlu0
        %v369 = vpop.trf.xlu0
        %v370 = vpop.trf.xlu0
        %v371 = vpop.trf.xlu0
        %v372 = vpop.trf.xlu0
        %v373 = vpop.trf.xlu0
        %v374 = vpop.trf.xlu0
        %v375 = vpop.trf.xlu0
        %v376 = vpop.trf.xlu0
        %v377 = vpop.trf.xlu0
        %v378 = vpop.trf.xlu0
        %v379 = vpop.trf.xlu0
        %v380 = vpop.trf.xlu0
        %vm381 = vcmask 916480
        %v383 = vsel %vm381, %v365, 0
        %v386 = vsel %vm381, %v366, 0
        %v389 = vsel %vm381, %v367, 0
        %v392 = vsel %vm381, %v368, 0
        %v395 = vsel %vm381, %v369, 0
        %v398 = vsel %vm381, %v370, 0
        %v401 = vsel %vm381, %v371, 0
        %v404 = vsel %vm381, %v372, 0
        %406 = vmatprep.subr.mxu0 0.0
        %407 = vmatpush1.msra.mxu0 %v335
        %408 = vmatprep.subr.mxu0 0.0
        %409 = vmatpush1.msra.mxu0 %v336
        %410 = vmatprep.subr.mxu0 0.0
        %411 = vmatpush1.msra.mxu0 %v337
        %412 = vmatprep.subr.mxu0 0.0
        %413 = vmatpush1.msra.mxu0 %v338
        %414 = vmatprep.subr.mxu0 0.0
        %415 = vmatpush1.msra.mxu0 %v339
        %416 = vmatprep.subr.mxu0 0.0
        %417 = vmatpush1.msra.mxu0 %v340
        %418 = vmatprep.subr.mxu0 0.0
        %419 = vmatpush1.msra.mxu0 %v341
        %420 = vmatprep.subr.mxu0 0.0
        %421 = vmatpush1.msra.mxu0 %v342
        %422 = vmatprep.subr.mxu0 0.0
        %423 = vmatpush1.msra.mxu0 %v343
        %424 = vmatprep.subr.mxu0 0.0
        %425 = vmatpush1.msra.mxu0 %v344
        %426 = vmatprep.subr.mxu0 0.0
        %427 = vmatpush1.msra.mxu0 %v345
        %428 = vmatprep.subr.mxu0 0.0
        %429 = vmatpush1.msra.mxu0 %v346
        %430 = vmatprep.subr.mxu0 0.0
        %431 = vmatpush1.msra.mxu0 %v347
        %432 = vmatprep.subr.mxu0 0.0
        %433 = vmatpush1.msra.mxu0 %v348
        %434 = vmatprep.subr.mxu0 0.0
        %435 = vmatpush1.msra.mxu0 0.0
        %436 = vmatprep.subr.mxu0 0.0
        %437 = vmatpush1.msra.mxu0 0.0
        %438 = vmatprep.subr.mxu0 0.0
        %439 = vmatpush1.msra.mxu0 0.0
        %440 = vmatprep.subr.mxu0 0.0
        %441 = vmatpush1.msra.mxu0 0.0
        %442 = vmatprep.subr.mxu0 0.0
        %443 = vmatpush1.msra.mxu0 0.0
        %444 = vmatprep.subr.mxu0 0.0
        %445 = vmatpush1.msra.mxu0 0.0
        %446 = vmatprep.subr.mxu0 0.0
        %447 = vmatpush1.msra.mxu0 0.0
        %448 = vmatprep.subr.mxu0 0.0
        %449 = vmatpush1.msra.mxu0 0.0
        %450 = vmatprep.subr.mxu0 0.0
        %451 = vmatpush1.msra.mxu0 0.0
        %452 = vmatprep.subr.mxu0 0.0
        %453 = vmatpush1.msra.mxu0 0.0
        %454 = vmatprep.subr.mxu0 0.0
        %455 = vmatpush1.msra.mxu0 0.0
        %456 = vmatprep.subr.mxu0 0.0
        %457 = vmatpush1.msra.mxu0 0.0
        %458 = vmatprep.subr.mxu0 0.0
        %459 = vmatpush1.msra.mxu0 0.0
        %460 = vmatprep.subr.mxu0 0.0
        %461 = vmatpush1.msra.mxu0 0.0
        %462 = vmatprep.subr.mxu0 0.0
        %463 = vmatpush1.msra.mxu0 0.0
        %464 = vmatprep.subr.mxu0 0.0
        %465 = vmatpush1.msra.mxu0 0.0
        %466 = vmatprep.subr.mxu0 0.0
        %467 = vmatpush1.msra.mxu0 0.0
        %468 = vmatprep.subr.mxu0 0.0
        %469 = vmatpush1.msra.mxu0 0.0
        %470 = vmatprep.mubr.f32.mxu0 0.0
        %471 = vmatmul.mubr.f32.gmra.mrb[0].mxu0 %v383
        %v472 = vpop.f32.mrb[0].mxu0
        %v473 = vadd.f32 0.0, %v472
        %v474 = vpop.f32.mrb[0].mxu0
        %475 = vmatprep.mubr.f32.mxu0 0.0
        %476 = vmatmul.mubr.f32.gmra.mrb[0].mxu0 %v386
        %v477 = vpop.f32.mrb[0].mxu0
        %v478 = vadd.f32 0.0, %v477
        %v479 = vpop.f32.mrb[0].mxu0
        %480 = vmatprep.mubr.f32.mxu0 0.0
        %481 = vmatmul.mubr.f32.gmra.mrb[0].mxu0 %v389
        %v482 = vpop.f32.mrb[0].mxu0
        %v483 = vadd.f32 0.0, %v482
        %v484 = vpop.f32.mrb[0].mxu0
        %485 = vmatprep.mubr.f32.mxu0 0.0
        %486 = vmatmul.mubr.f32.gmra.mrb[0].mxu0 %v392
        %v487 = vpop.f32.mrb[0].mxu0
        %v488 = vadd.f32 0.0, %v487
        %v489 = vpop.f32.mrb[0].mxu0
        %490 = vmatprep.mubr.f32.mxu0 0.0
        %491 = vmatmul.mubr.f32.gmra.mrb[0].mxu0 %v395
        %v492 = vpop.f32.mrb[0].mxu0
        %v493 = vadd.f32 0.0, %v492
        %v494 = vpop.f32.mrb[0].mxu0
        %495 = vmatprep.mubr.f32.mxu0 0.0
        %496 = vmatmul.mubr.f32.gmra.mrb[0].mxu0 %v398
        %v497 = vpop.f32.mrb[0].mxu0
        %v498 = vadd.f32 0.0, %v497
        %v499 = vpop.f32.mrb[0].mxu0
        %500 = vmatprep.mubr.f32.mxu0 0.0
        %501 = vmatmul.mubr.f32.gmra.mrb[0].mxu0 %v401
        %v502 = vpop.f32.mrb[0].mxu0
        %v503 = vadd.f32 0.0, %v502
        %v504 = vpop.f32.mrb[0].mxu0
        %505 = vmatprep.mubr.f32.mxu0 0.0
        %506 = vmatmul.mubr.f32.gmra.mrb[0].mxu0 %v404
        %v507 = vpop.f32.mrb[0].mxu0
        %v508 = vadd.f32 0.0, %v507
        %v509 = vpop.f32.mrb[0].mxu0
        %510 = vdwg.mxu0
        %v511 = vadd.f32 %v313, %v473
        %v512 = vadd.f32 %v314, %v478
        %v513 = vadd.f32 %v315, %v483
        %v514 = vadd.f32 %v316, %v488
        %v515 = vadd.f32 %v317, %v493
        %v516 = vadd.f32 %v318, %v498
        %v517 = vadd.f32 %v319, %v503
        %v518 = vadd.f32 %v320, %v508
        %vm519 = vcmask 64512
        %520 = vst.msk [vmem:[#allocation2] sm:$0xff] %vm519, %v511
        %521 = vst.msk [vmem:[#allocation2 + $0x8] sm:$0xff] %vm519, %v512
        %522 = vst.msk [vmem:[#allocation2 + $0x10] sm:$0xff] %vm519, %v513
        %523 = vst.msk [vmem:[#allocation2 + $0x18] sm:$0xff] %vm519, %v514
        %524 = vst.msk [vmem:[#allocation2 + $0x20] sm:$0xff] %vm519, %v515
        %525 = vst.msk [vmem:[#allocation2 + $0x28] sm:$0xff] %vm519, %v516
        %526 = vst.msk [vmem:[#allocation2 + $0x30] sm:$0xff] %vm519, %v517
        %527 = vst.msk [vmem:[#allocation2 + $0x38] sm:$0xff] %vm519, %v518
        %p528 = scmp.eq.s32.totalorder %s25, 1
        // Predicated region
        $region49: #{tpu_custom_call.1} parent=43 // pred_check
          %p529 = pneg %p528
        $region50: #{tpu_custom_call.1} parent=43 // pred_check_branch
          %531 = sbr.rel (%p529) target = $region52
        $region51: #{tpu_custom_call.1} parent=43 // pred_region
          %v532 = vld [vmem:[#allocation2] sm:$0xff]
          %v533 = vld [vmem:[#allocation2 + $0x8] sm:$0xff]
          %v534 = vld [vmem:[#allocation2 + $0x10] sm:$0xff]
          %v535 = vld [vmem:[#allocation2 + $0x18] sm:$0xff]
          %v536 = vld [vmem:[#allocation2 + $0x20] sm:$0xff]
          %v537 = vld [vmem:[#allocation2 + $0x28] sm:$0xff]
          %v538 = vld [vmem:[#allocation2 + $0x30] sm:$0xff]
          %v539 = vld [vmem:[#allocation2 + $0x38] sm:$0xff]
          %v540 = vld [vmem:[%s2] sm:$0xff]
          %v542 = vsel %vm519, %v532, 0
          %v545 = vsel %vm519, %v533, 0
          %v548 = vsel %vm519, %v534, 0
          %v551 = vsel %vm519, %v535, 0
          %v554 = vsel %vm519, %v536, 0
          %v557 = vsel %vm519, %v537, 0
          %v560 = vsel %vm519, %v538, 0
          %v563 = vsel %vm519, %v539, 0
          %565 = vmatprep.subr.mxu0 0.0
          %566 = vmatpush1.msra.mxu0 %v540
          %567 = vmatprep.subr.mxu0 0.0
          %568 = vmatpush1.msra.mxu0 0.0
          %569 = vmatprep.subr.mxu0 0.0
          %570 = vmatpush1.msra.mxu0 0.0
          %571 = vmatprep.subr.mxu0 0.0
          %572 = vmatpush1.msra.mxu0 0.0
          %573 = vmatprep.subr.mxu0 0.0
          %574 = vmatpush1.msra.mxu0 0.0
          %575 = vmatprep.subr.mxu0 0.0
          %576 = vmatpush1.msra.mxu0 0.0
          %577 = vmatprep.subr.mxu0 0.0
          %578 = vmatpush1.msra.mxu0 0.0
          %579 = vmatprep.subr.mxu0 0.0
          %580 = vmatpush1.msra.mxu0 0.0
          %581 = vmatprep.subr.mxu0 0.0
          %582 = vmatpush1.msra.mxu0 0.0
          %583 = vmatprep.subr.mxu0 0.0
          %584 = vmatpush1.msra.mxu0 0.0
          %585 = vmatprep.subr.mxu0 0.0
          %586 = vmatpush1.msra.mxu0 0.0
          %587 = vmatprep.subr.mxu0 0.0
          %588 = vmatpush1.msra.mxu0 0.0
          %589 = vmatprep.subr.mxu0 0.0
          %590 = vmatpush1.msra.mxu0 0.0
          %591 = vmatprep.subr.mxu0 0.0
          %592 = vmatpush1.msra.mxu0 0.0
          %593 = vmatprep.subr.mxu0 0.0
          %594 = vmatpush1.msra.mxu0 0.0
          %595 = vmatprep.subr.mxu0 0.0
          %596 = vmatpush1.msra.mxu0 0.0
          %597 = vmatprep.subr.mxu0 0.0
          %598 = vmatpush1.msra.mxu0 0.0
          %599 = vmatprep.subr.mxu0 0.0
          %600 = vmatpush1.msra.mxu0 0.0
          %601 = vmatprep.subr.mxu0 0.0
          %602 = vmatpush1.msra.mxu0 0.0
          %603 = vmatprep.subr.mxu0 0.0
          %604 = vmatpush1.msra.mxu0 0.0
          %605 = vmatprep.subr.mxu0 0.0
          %606 = vmatpush1.msra.mxu0 0.0
          %607 = vmatprep.subr.mxu0 0.0
          %608 = vmatpush1.msra.mxu0 0.0
          %609 = vmatprep.subr.mxu0 0.0
          %610 = vmatpush1.msra.mxu0 0.0
          %611 = vmatprep.subr.mxu0 0.0
          %612 = vmatpush1.msra.mxu0 0.0
          %613 = vmatprep.subr.mxu0 0.0
          %614 = vmatpush1.msra.mxu0 0.0
          %615 = vmatprep.subr.mxu0 0.0
          %616 = vmatpush1.msra.mxu0 0.0
          %617 = vmatprep.subr.mxu0 0.0
          %618 = vmatpush1.msra.mxu0 0.0
          %619 = vmatprep.subr.mxu0 0.0
          %620 = vmatpush1.msra.mxu0 0.0
          %621 = vmatprep.subr.mxu0 0.0
          %622 = vmatpush1.msra.mxu0 0.0
          %623 = vmatprep.subr.mxu0 0.0
          %624 = vmatpush1.msra.mxu0 0.0
          %625 = vmatprep.subr.mxu0 0.0
          %626 = vmatpush1.msra.mxu0 0.0
          %627 = vmatprep.subr.mxu0 0.0
          %628 = vmatpush1.msra.mxu0 0.0
          %629 = vmatprep.mubr.f32.mxu0 0.0
          %630 = vmatmul.mubr.f32.gmra.mrb[0].mxu0 %v542
          %v631 = vpop.f32.mrb[0].mxu0
          %v632 = vadd.f32 0.0, %v631
          %v633 = vpop.f32.mrb[0].mxu0
          %634 = vmatprep.mubr.f32.mxu0 0.0
          %635 = vmatmul.mubr.f32.gmra.mrb[0].mxu0 %v545
          %v636 = vpop.f32.mrb[0].mxu0
          %v637 = vadd.f32 0.0, %v636
          %v638 = vpop.f32.mrb[0].mxu0
          %639 = vmatprep.mubr.f32.mxu0 0.0
          %640 = vmatmul.mubr.f32.gmra.mrb[0].mxu0 %v548
          %v641 = vpop.f32.mrb[0].mxu0
          %v642 = vadd.f32 0.0, %v641
          %v643 = vpop.f32.mrb[0].mxu0
          %644 = vmatprep.mubr.f32.mxu0 0.0
          %645 = vmatmul.mubr.f32.gmra.mrb[0].mxu0 %v551
          %v646 = vpop.f32.mrb[0].mxu0
          %v647 = vadd.f32 0.0, %v646
          %v648 = vpop.f32.mrb[0].mxu0
          %649 = vmatprep.mubr.f32.mxu0 0.0
          %650 = vmatmul.mubr.f32.gmra.mrb[0].mxu0 %v554
          %v651 = vpop.f32.mrb[0].mxu0
          %v652 = vadd.f32 0.0, %v651
          %v653 = vpop.f32.mrb[0].mxu0
          %654 = vmatprep.mubr.f32.mxu0 0.0
          %655 = vmatmul.mubr.f32.gmra.mrb[0].mxu0 %v557
          %v656 = vpop.f32.mrb[0].mxu0
          %v657 = vadd.f32 0.0, %v656
          %v658 = vpop.f32.mrb[0].mxu0
          %659 = vmatprep.mubr.f32.mxu0 0.0
          %660 = vmatmul.mubr.f32.gmra.mrb[0].mxu0 %v560
          %v661 = vpop.f32.mrb[0].mxu0
          %v662 = vadd.f32 0.0, %v661
          %v663 = vpop.f32.mrb[0].mxu0
          %664 = vmatprep.mubr.f32.mxu0 0.0
          %665 = vmatmul.mubr.f32.gmra.mrb[0].mxu0 %v563
          %v666 = vpop.f32.mrb[0].mxu0
          %v667 = vadd.f32 0.0, %v666
          %v668 = vpop.f32.mrb[0].mxu0
          %669 = vdwg.mxu0
          %v670 = vld [vmem:[%s3] sm:$0x1]
          %v672 = vlaneseq
          %v673 = vshrl.u32 %v672, 7
          %v674 = vsub.s32 0, %v673
          %v675 = vrot.slane %v670, %v674
          %v677 = vmul.f32 %v632, %v675
          %v678 = vmul.f32 %v637, %v675
          %v679 = vmul.f32 %v642, %v675
          %v680 = vmul.f32 %v647, %v675
          %v681 = vmul.f32 %v652, %v675
          %v682 = vmul.f32 %v657, %v675
          %v683 = vmul.f32 %v662, %v675
          %v684 = vmul.f32 %v667, %v675
          %v685 = vld [vmem:[%s4] sm:$0x1]
          %v687 = vlaneseq
          %v688 = vshrl.u32 %v687, 7
          %v689 = vsub.s32 0, %v688
          %v690 = vrot.slane %v685, %v689
          %v692 = vadd.f32 %v677, %v690
          %v693 = vadd.f32 %v678, %v690
          %v694 = vadd.f32 %v679, %v690
          %v695 = vadd.f32 %v680, %v690
          %v696 = vadd.f32 %v681, %v690
          %v697 = vadd.f32 %v682, %v690
          %v698 = vadd.f32 %v683, %v690
          %v699 = vadd.f32 %v684, %v690
          %v700 = vmax.f32 %v692, 0.0
          %v701 = vmax.f32 %v693, 0.0
          %v702 = vmax.f32 %v694, 0.0
          %v703 = vmax.f32 %v695, 0.0
          %v704 = vmax.f32 %v696, 0.0
          %v705 = vmax.f32 %v697, 0.0
          %v706 = vmax.f32 %v698, 0.0
          %v707 = vmax.f32 %v699, 0.0
          %v708 = vld [vmem:[%s5] sm:$0xff]
          %v709 = vld [vmem:[%s5 + $0x8] sm:$0xff]
          %v710 = vld [vmem:[%s5 + $0x10] sm:$0xff]
          %v711 = vld [vmem:[%s5 + $0x18] sm:$0xff]
          %v712 = vld [vmem:[%s5 + $0x20] sm:$0xff]
          %v713 = vld [vmem:[%s5 + $0x28] sm:$0xff]
          %v714 = vld [vmem:[%s5 + $0x30] sm:$0xff]
          %v715 = vld [vmem:[%s5 + $0x38] sm:$0xff]
          %v716 = vmul.f32 %v700, %v708
          %v717 = vmul.f32 %v701, %v709
          %v718 = vmul.f32 %v702, %v710
          %v719 = vmul.f32 %v703, %v711
          %v720 = vmul.f32 %v704, %v712
          %v721 = vmul.f32 %v705, %v713
          %v722 = vmul.f32 %v706, %v714
          %v723 = vmul.f32 %v707, %v715
          %vm724 = vcmask 523264
          %725 = vst.msk [vmem:[%s283] sm:$0xff] %vm724, %v716
          %726 = vst.msk [vmem:[%s283 + $0x8] sm:$0xff] %vm724, %v717
          %727 = vst.msk [vmem:[%s283 + $0x10] sm:$0xff] %vm724, %v718
          %728 = vst.msk [vmem:[%s283 + $0x18] sm:$0xff] %vm724, %v719
          %729 = vst.msk [vmem:[%s283 + $0x20] sm:$0xff] %vm724, %v720
          %730 = vst.msk [vmem:[%s283 + $0x28] sm:$0xff] %vm724, %v721
          %731 = vst.msk [vmem:[%s283 + $0x30] sm:$0xff] %vm724, %v722
          %732 = vst.msk [vmem:[%s283 + $0x38] sm:$0xff] %vm724, %v723
        $region52: #{tpu_custom_call.1} parent=43 // pred_fallthru
          _
        %s733 = sand.u32 %s178, 1
        %s734 = scalar_lea.sflag [#allocation4], %s733
        %s735 = sand.u32 %s178, 1
        %s736 = smul.addr %s735, 64
        %s737 = scalar_lea.vmem [#allocation3], %s736
        // Predicated region
        $region53: #{tpu_custom_call.1} parent=43 // pred_check
          %p738 = pneg %p188
        $region54: #{tpu_custom_call.1} parent=43 // pred_check_branch
          %740 = sbr.rel (%p738) target = $region56
        $region55: #{tpu_custom_call.1} parent=43 // pred_region
          %s742 = ssub.s32 1024, 1024
          %743 = vsyncadd %s734, %s742
          %s744 = smul.addr %s24, 8
          %s745 = smul.addr %s744, 128
          %s746 = scalar_lea.hbm %s6, %s745
          %s747 = sshll.u32 %s737, 4
          %s748 = int_to_ptr.vmem [resolvable:$true] %s747
          %753 = dma.vmem_to_hbm [thread:$0]  %s748, 1024, %s746, %s734, 128, 128, 8
        $region56: #{tpu_custom_call.1} parent=43 // pred_fallthru
          _
      $region44: #{tpu_custom_call.1} parent=5 // pred_fallthru
        _
      %p754 = scmp.le.s32.totalorder 2, %s15
      // Predicated region
      $region57: #{tpu_custom_call.1} parent=5 // pred_check
        %p755 = pneg %p754
      $region58: #{tpu_custom_call.1} parent=5 // pred_check_branch
        %757 = sbr.rel (%p755) target = $region60
      $region59: #{tpu_custom_call.1} parent=5 // pred_region
        %s758 = ssub.s32 %s15, 2
        // Predicated region
        $region61: #{tpu_custom_call.1} parent=59 // pred_check
          %p759 = pneg %p194
        $region62: #{tpu_custom_call.1} parent=59 // pred_check_branch
          %761 = sbr.rel (%p759) target = $region64
        $region63: #{tpu_custom_call.1} parent=59 // pred_region
          %s762 = sand.u32 %s179, 1
          %s763 = scalar_lea.sflag [#allocation4], %s762
          %s764 = sand.u32 %s179, 1
          %s765 = smul.addr %s764, 64
          %s766 = scalar_lea.vmem [#allocation3], %s765
          %767 = dma.done %s763, 1024
        $region64: #{tpu_custom_call.1} parent=59 // pred_fallthru
          _
      $region60: #{tpu_custom_call.1} parent=5 // pred_fallthru
        _
    $region6: #{tpu_custom_call.1} parent=1 // loop_footer
      %s19 = sadd.s32 1, %s15
    $region7: #{tpu_custom_call.1} parent=1 // loop_footer_branch
      %14 = sbr.rel target = $region3
    $region8: #{tpu_custom_call.1} parent=1 // loop_exit
      _
    %768 = vsyncpa [#allocation4], 1
    %s769 = scalar_lea.sflag [#allocation4], 1
    %770 = vsyncpa %s769, 1

</llo_original>
